<compile_context>
chip_gen: v6e
topology: v6e:2x2x1
jax: 0.10.0
libtpu: 0.0.40
codegen_flags: <defaults>
</compile_context>

<pallas_src>
import functools

import jax
import jax.numpy as jnp
from jax import lax
from jax.experimental import pallas as pl
from jax.experimental.pallas import tpu as pltpu


def _round_up(n, m):
    return ((n + m - 1) // m) * m


def _cdiv(n, m):
    return (n + m - 1) // m


def cartpole_rev_kernel(x_ref, y_ref, w_blk_ref, b_cat_ref, w_head_ref,
                        b_head_ref, out_ref, *, chunk, n_chunks):
    # Loop-invariant operands: load once and hoist the sublane broadcasts out
    # of the loop (JAX does not CSE broadcast_in_dim inside loop bodies).
    w_blk = w_blk_ref[...]                                     # [8, 128]  bf16
    b_cat = jnp.broadcast_to(b_cat_ref[...], (chunk, 128))     # [chunk, 128] f32
    w_head = jnp.broadcast_to(w_head_ref[...], (chunk, 128))   # [chunk, 128] f32
    b_head = b_head_ref[0]                                     # scalar from SMEM

    def body(c, carry):
        start = pl.multiple_of(c * chunk, chunk)
        xc = x_ref[pl.ds(start, chunk), :]                     # [chunk, 4] f32
        yc = y_ref[pl.ds(start, chunk), :]                     # [chunk, 4] f32

        # Fused shared encoder: pack [x | y] in VMEM and hit the block-diagonal
        # [8, 128] weight once -> [hx_pre | hy_pre] with a single LHS stream.
        xy = jnp.concatenate([xc, yc], axis=1).astype(jnp.bfloat16)   # [chunk, 8]
        h = jnp.dot(xy, w_blk, preferred_element_type=jnp.float32)    # [chunk, 128]
        h = jnp.maximum(h + b_cat, 0.0)                        # bias + ReLU (f32)

        # Head Linear(128, 1) in f32 on VPU (multiply) + XLU (lane reduction):
        # keeps the MXU free for the next chunk's encoder and avoids any
        # transposed dot_general / stationary push of the activation.
        out = jnp.sum(h * w_head, axis=1, keepdims=True) + b_head     # [chunk, 1]
        out_ref[pl.ds(start, chunk), :] = out
        return carry

    lax.fori_loop(0, n_chunks, body, 0, unroll=True)


def cartpole_rev(x, y, w_enc, b_enc, w_head, b_head, *,
                 block_b=32768, chunk_b=2048):
    """x, y: [B, 4].  w_enc: [64, 4], b_enc: [64], w_head: [1, 128],
    b_head: [1]  (PyTorch nn.Linear layout).  Returns [B, 1] float32."""
    f32, bf16 = jnp.float32, jnp.bfloat16
    B = x.shape[0]
    x = x.astype(f32)
    y = y.astype(f32)

    # Block-diagonal fused encoder weight (bf16 MXU operand):
    #   [x | y] @ W_blk == [hx_pre | hy_pre],  W_blk = [[W_enc.T, 0], [0, W_enc.T]]
    w_enc_t = jnp.asarray(w_enc, f32).T                         # [4, 64]
    zeros = jnp.zeros((4, 64), f32)
    w_blk = jnp.concatenate(
        [jnp.concatenate([w_enc_t, zeros], axis=1),
         jnp.concatenate([zeros, w_enc_t], axis=1)], axis=0).astype(bf16)  # [8,128]
    b_cat = jnp.tile(jnp.asarray(b_enc, f32), 2).reshape(1, 128)    # [1, 128]
    w_head_row = jnp.asarray(w_head, f32).reshape(1, 128)           # [1, 128]
    b_head_s = jnp.asarray(b_head, f32).reshape(1)                  # SMEM scalar

    # --- batch tiling --------------------------------------------------------
    # Big outer tiles amortize the per-grid-step overhead; the kernel's inner
    # fori_loop re-tiles them into chunk-row pieces so VMEM is bounded by the
    # chunk (not tm) regardless of generation.
    b128 = _round_up(B, 128)
    tm = min(_round_up(block_b, 128), b128)
    if b128 > 128:                        # keep >= 2 grid steps for v7x megacore
        tm = min(tm, _round_up(_cdiv(b128, 2), 128))
    tm = max(tm, 128)
    chunk = min(_round_up(chunk_b, 128), tm)
    tm = _round_up(tm, chunk)             # inner loop must tile tm exactly
    grid = _cdiv(B, tm)                   # ragged last block handled by Pallas
    n_chunks = tm // chunk

    kernel = functools.partial(cartpole_rev_kernel, chunk=chunk,
                               n_chunks=n_chunks)

    out = pl.pallas_call(
        kernel,
        out_shape=jax.ShapeDtypeStruct((B, 1), f32),
        grid=(grid,),
        in_specs=[
            pl.BlockSpec((tm, 4), lambda i: (i, 0)),             # x rows (direct)
            pl.BlockSpec((tm, 4), lambda i: (i, 0)),             # y rows (direct)
            pl.BlockSpec((8, 128), lambda i: (0, 0)),            # fused encoder W
            pl.BlockSpec((1, 128), lambda i: (0, 0)),            # fused encoder b
            pl.BlockSpec((1, 128), lambda i: (0, 0)),            # head row
            pl.BlockSpec(memory_space=pltpu.MemorySpace.SMEM),   # head bias
        ],
        out_specs=pl.BlockSpec((tm, 1), lambda i: (i, 0)),
        compiler_params=pltpu.CompilerParams(
            dimension_semantics=("parallel",),
            # Chunked design keeps live VMEM ~6 MiB at the defaults; 32 MiB is
            # ample headroom and within every generation's physical VMEM.
            vmem_limit_bytes=32 * 1024 * 1024,
        ),
    )(x, y, w_blk, b_cat, w_head_row, b_head_s)
    return out


def _reference(x, y, w_enc, b_enc, w_head, b_head):
    hi = lax.Precision.HIGHEST
    hx = jnp.maximum(jnp.dot(x, w_enc.T, precision=hi) + b_enc, 0.0)
    hy = jnp.maximum(jnp.dot(y, w_enc.T, precision=hi) + b_enc, 0.0)
    cat = jnp.concatenate([hx, hy], axis=1)
    return jnp.dot(cat, w_head.T, precision=hi) + b_head


def _reference_bf16_ops(x, y, w_enc, b_enc, w_head, b_head):
    # Same math with the encoder matmul operands rounded to bf16 (matches the
    # kernel's MXU dtype choice); accumulation / bias / ReLU / head stay f32.
    hi = lax.Precision.HIGHEST
    rt = lambda a: a.astype(jnp.bfloat16).astype(jnp.float32)
    hx = jnp.maximum(jnp.dot(rt(x), rt(w_enc).T, precision=hi) + b_enc, 0.0)
    hy = jnp.maximum(jnp.dot(rt(y), rt(w_enc).T, precision=hi) + b_enc, 0.0)
    cat = jnp.concatenate([hx, hy], axis=1)
    return jnp.sum(cat * w_head, axis=1, keepdims=True) + b_head


if __name__ == "__main__":
    key = jax.random.PRNGKey(0)
    k_x, k_y, k_we, k_be, k_wh, k_bh = jax.random.split(key, 6)

    # Deterministic parameters mimicking nn.Linear's U(-1/sqrt(fan_in), ...).
    bound_enc = 1.0 / jnp.sqrt(4.0)
    w_enc = jax.random.uniform(k_we, (64, 4), jnp.float32, -bound_enc, bound_enc)
    b_enc = jax.random.uniform(k_be, (64,), jnp.float32, -bound_enc, bound_enc)
    bound_hd = 1.0 / jnp.sqrt(128.0)
    w_head = jax.random.uniform(k_wh, (1, 128), jnp.float32, -bound_hd, bound_hd)
    b_head = jax.random.uniform(k_bh, (1,), jnp.float32, -bound_hd, bound_hd)

    fwd = jax.jit(cartpole_rev, static_argnames=("block_b", "chunk_b"))

    # Small-batch check: single tile, single inner chunk, ragged blocks.
    B = 8
    x = jax.random.normal(k_x, (B, 4), dtype=jnp.float32)
    y = jax.random.normal(k_y, (B, 4), dtype=jnp.float32)
    out = jax.block_until_ready(fwd(x, y, w_enc, b_enc, w_head, b_head))
    assert out.shape == (B, 1), out.shape
    ref_bf = _reference_bf16_ops(x, y, w_enc, b_enc, w_head, b_head)
    ref_f32 = _reference(x, y, w_enc, b_enc, w_head, b_head)
    assert jnp.allclose(out, ref_bf, atol=1e-4, rtol=1e-4), (out, ref_bf)
    assert jnp.allclose(out, ref_f32, atol=3e-2, rtol=3e-2), (out, ref_f32)

    # Multi-tile check: grid of 2, 2 inner chunks per tile, ragged final block.
    B2 = 1000
    x2 = jax.random.normal(k_x, (B2, 4), dtype=jnp.float32)
    y2 = jax.random.normal(k_y, (B2, 4), dtype=jnp.float32)
    out2 = jax.block_until_ready(
        fwd(x2, y2, w_enc, b_enc, w_head, b_head, block_b=512, chunk_b=256))
    assert out2.shape == (B2, 1), out2.shape
    ref2_bf = _reference_bf16_ops(x2, y2, w_enc, b_enc, w_head, b_head)
    ref2_f32 = _reference(x2, y2, w_enc, b_enc, w_head, b_head)
    assert jnp.allclose(out2, ref2_bf, atol=1e-4, rtol=1e-4)
    assert jnp.allclose(out2, ref2_f32, atol=3e-2, rtol=3e-2)

    print("KERNEL_OK")
</pallas_src>

<mosaic_0001>
module attributes {stable_mosaic.version = 11 : i64} {
  func.func @cartpole_rev_kernel(%arg0: i32, %arg1: memref<128x4xf32, #tpu.memory_space<vmem>>, %arg2: memref<128x4xf32, #tpu.memory_space<vmem>>, %arg3: memref<8x128xbf16, #tpu.memory_space<vmem>>, %arg4: memref<1x128xf32, #tpu.memory_space<vmem>>, %arg5: memref<1x128xf32, #tpu.memory_space<vmem>>, %arg6: memref<1xf32, #tpu.memory_space<smem>>, %arg7: memref<128x1xf32, #tpu.memory_space<vmem>>) attributes {dimension_semantics = [#tpu.dimension_semantics<parallel>], iteration_bounds = array<i64: 1>, scalar_prefetch = 0 : i64, scratch_operands = 0 : i64, tpu.core_type = #tpu.core_type<tc>, window_params = [{transform_indices = @transform_0, window_bounds = array<i64: 128, 4>}, {transform_indices = @transform_1, window_bounds = array<i64: 128, 4>}, {pipeline_mode = #tpu.pipeline_mode<synchronous>, transform_indices = @transform_2, window_bounds = array<i64: 8, 128>}, {pipeline_mode = #tpu.pipeline_mode<synchronous>, transform_indices = @transform_3, window_bounds = array<i64: 1, 128>}, {pipeline_mode = #tpu.pipeline_mode<synchronous>, transform_indices = @transform_4, window_bounds = array<i64: 1, 128>}, {transform_indices = @transform_5, window_bounds = array<i64: 1>}, {transform_indices = @transform_6, window_bounds = array<i64: 128, 1>}]} {
    %c0 = arith.constant 0 : index
    %c0_0 = arith.constant 0 : index
    %0 = vector.load %arg3[%c0, %c0_0] : memref<8x128xbf16, #tpu.memory_space<vmem>>, vector<8x128xbf16>
    %c0_1 = arith.constant 0 : index
    %c0_2 = arith.constant 0 : index
    %1 = vector.load %arg4[%c0_1, %c0_2] : memref<1x128xf32, #tpu.memory_space<vmem>>, vector<1x128xf32>
    %2 = vector.shape_cast %1 : vector<1x128xf32> to vector<1x128xf32>
    %3 = vector.broadcast %2 : vector<1x128xf32> to vector<128x128xf32>
    %c0_3 = arith.constant 0 : index
    %c0_4 = arith.constant 0 : index
    %4 = vector.load %arg5[%c0_3, %c0_4] : memref<1x128xf32, #tpu.memory_space<vmem>>, vector<1x128xf32>
    %5 = vector.shape_cast %4 : vector<1x128xf32> to vector<1x128xf32>
    %6 = vector.broadcast %5 : vector<1x128xf32> to vector<128x128xf32>
    %c0_5 = arith.constant 0 : index
    %7 = memref.load %arg6[%c0_5] : memref<1xf32, #tpu.memory_space<smem>>
    %c0_i32 = arith.constant 0 : i32
    %c128_i32 = arith.constant 128 : i32
    %8 = arith.muli %c0_i32, %c128_i32 : i32
    %9 = tpu.assume_multiple %8, 128 : i32
    %10 = arith.index_cast %9 : i32 to index
    %c0_6 = arith.constant 0 : index
    %11 = vector.load %arg1[%10, %c0_6] : memref<128x4xf32, #tpu.memory_space<vmem>>, vector<128x4xf32>
    %12 = arith.index_cast %9 : i32 to index
    %c0_7 = arith.constant 0 : index
    %13 = vector.load %arg2[%12, %c0_7] : memref<128x4xf32, #tpu.memory_space<vmem>>, vector<128x4xf32>
    %14 = tpu.concatenate %11, %13 in 1 : vector<128x4xf32>, vector<128x4xf32> -> vector<128x8xf32>
    %15 = arith.truncf %14 : vector<128x8xf32> to vector<128x8xbf16>
    %cst = arith.constant dense<0.000000e+00> : vector<128x128xf32>
    %16 = tpu.matmul %15, %0, %cst {dimension_numbers = #tpu.dot_dimension_numbers<[1], [0], [0], [1], [0, 0, 1, 1], [], []>} : vector<128x8xbf16>, vector<8x128xbf16>, vector<128x128xf32> -> vector<128x128xf32>
    %17 = arith.addf %16, %3 : vector<128x128xf32>
    %cst_8 = arith.constant 0.000000e+00 : f32
    %18 = vector.broadcast %cst_8 : f32 to vector<128x128xf32>
    %19 = arith.maximumf %17, %18 : vector<128x128xf32>
    %20 = arith.mulf %19, %6 : vector<128x128xf32>
    %cst_9 = arith.constant dense<0.000000e+00> : vector<128xf32>
    %21 = vector.multi_reduction <add>, %20, %cst_9 [1] : vector<128x128xf32> to vector<128xf32>
    %22 = vector.shape_cast %21 : vector<128xf32> to vector<128x1xf32>
    %23 = vector.broadcast %7 : f32 to vector<128x1xf32>
    %24 = arith.addf %22, %23 : vector<128x1xf32>
    %25 = arith.index_cast %9 : i32 to index
    %c0_10 = arith.constant 0 : index
    %26 = vector.load %arg7[%25, %c0_10] : memref<128x1xf32, #tpu.memory_space<vmem>>, vector<128x1xf32>
    tpu.vector_store %arg7[%25, %c0_10], %24 {strides = array<i32>} : memref<128x1xf32, #tpu.memory_space<vmem>>, vector<128x1xf32>,
    %c1_i32 = arith.constant 1 : i32
    return
  }
  func.func @transform_0(%arg0: i32) -> (i32, i32) {
    %c0_i32 = arith.constant 0 : i32
    %c0_i32_0 = arith.constant 0 : i32
    return %arg0, %c0_i32 : i32, i32
  }
  func.func @transform_1(%arg0: i32) -> (i32, i32) {
    %c0_i32 = arith.constant 0 : i32
    %c0_i32_0 = arith.constant 0 : i32
    return %arg0, %c0_i32 : i32, i32
  }
  func.func @transform_2(%arg0: i32) -> (i32, i32) {
    %c0_i32 = arith.constant 0 : i32
    %c0_i32_0 = arith.constant 0 : i32
    %c0_i32_1 = arith.constant 0 : i32
    return %c0_i32, %c0_i32_0 : i32, i32
  }
  func.func @transform_3(%arg0: i32) -> (i32, i32) {
    %c0_i32 = arith.constant 0 : i32
    %c0_i32_0 = arith.constant 0 : i32
    %c0_i32_1 = arith.constant 0 : i32
    return %c0_i32, %c0_i32_0 : i32, i32
  }
  func.func @transform_4(%arg0: i32) -> (i32, i32) {
    %c0_i32 = arith.constant 0 : i32
    %c0_i32_0 = arith.constant 0 : i32
    %c0_i32_1 = arith.constant 0 : i32
    return %c0_i32, %c0_i32_0 : i32, i32
  }
  func.func @transform_5(%arg0: i32) -> i32 {
    %c0_i32 = arith.constant 0 : i32
    %c0_i32_0 = arith.constant 0 : i32
    return %c0_i32 : i32
  }
  func.func @transform_6(%arg0: i32) -> (i32, i32) {
    %c0_i32 = arith.constant 0 : i32
    %c0_i32_0 = arith.constant 0 : i32
    return %arg0, %c0_i32 : i32, i32
  }
}

</mosaic_0001>

<llo_original>
// kernel: tile.9
$region0: #{tile.9}
  %s0 = inlined_call_operand.vmem [shape: f32[2,64], index: 0, kind: input, shape index: {}]
  %s1 = inlined_call_operand.vmem [shape: f32[1,128], index: 1, kind: output, shape index: {}]
  $region1: #{tile.9} parent=0
    #allocation0 [shape = 'u8[4096]{0}', space=vmem, size = 0x1000, scoped, tag = 'scoped mem for output reshape']
    #allocation1 [shape = 'u8[4096]{0}', space=vmem, size = 0x1000, scoped, tag = 'scoped mem for input reshape']
    %s3 = sshll.u32 1, 2
    %s4 = ssub.s32 %s3, 1
    %v5 = vld [vmem:[%s0] sm:%s4]
    %6 = vst [vmem:[#allocation1] sm:%s4] %v5
    %v7 = vld [vmem:[#allocation1] sm:$0x1]
    %vm8 = vcmask 523264
    %9 = vst.msk [vmem:[#allocation0] sm:$0x1] %vm8, %v7
    %s10 = scalar_lea.vmem [#allocation1], 1
    %v11 = vld [vmem:[%s10] sm:$0x1]
    %12 = vrot.lane.b32.xlu0 %v11, 64
    %v13 = vpop.permute.xlu0 %12
    %vm14 = vcmask 1048064
    %15 = vst.msk [vmem:[#allocation0] sm:$0x1] %vm14, %v13
    %s17 = sshll.u32 1, 1
    %s18 = ssub.s32 %s17, 1
    %v20 = vld [vmem:[#allocation0] sm:%s18]
    %s21 = sshll.u32 1, 1
    %s22 = ssub.s32 %s21, 1
    %23 = vst [vmem:[%s1] sm:%s22] %v20

// kernel: tile.8
$region0: #{tile.8}
  #allocation0 [shape = 's32[1]{0}', space=sflag, size = 0x4, scoped, tag = 'scoped memory for tile.8']
  %s0 = inlined_call_operand.vmem [shape: f32[64], index: 0, kind: input, shape index: {}]
  %s1 = inlined_call_operand.vmem [shape: f32[2,64], index: 1, kind: output, shape index: {}]
  // Predicated region
  $region2: #{tile.8} parent=0 // pred_check
    _
  $region3: #{tile.8} parent=0 // pred_check_branch
    %3 = sbr.rel (0) target = $region5
  $region4: #{tile.8} parent=0 // pred_region
    _
  $region5: #{tile.8} parent=0 // pred_fallthru
    _
  %v4 = vld [vmem:[%s0] ss:$0 sm:$0xff]
  %5 = vst [vmem:[%s1] sm:$0x3] %v4

// kernel: cartpole_rev.1
$region0: #{cartpole_rev.1}
  #allocation0 [shape = 'u32[]', space=smem, size = 0x4, offset = 0x4, fixed_abs, tag = 'smem constant byte address 0x4 - core index']
  #allocation1 [shape = 'u32[144,128]{1,0:T(1,128)}', space=vmem, size = 0x12000, scoped, tag = 'internal scratch']
  #allocation2 [shape = 'f32[1]{0:T(128)S(6)}', space=smem, size = 0x200, scoped, tag = 'scoped memory for cartpole_rev.1']
  %s0 = inlined_call_operand.vmem [shape: f32[8,4], index: 0, kind: input, shape index: {}]
  %s1 = inlined_call_operand.vmem [shape: f32[8,4], index: 1, kind: input, shape index: {}]
  %s2 = inlined_call_operand.vmem [shape: bf16[8,128], index: 2, kind: input, shape index: {}]
  %s3 = inlined_call_operand.vmem [shape: f32[1,128], index: 3, kind: input, shape index: {}]
  %s4 = inlined_call_operand.vmem [shape: f32[1,128], index: 4, kind: input, shape index: {}]
  %s5 = inlined_call_operand.<no memory space> [shape: f32[1], index: 5, kind: input, shape index: {}]
  %s6 = inlined_call_operand.vmem [shape: f32[8,1], index: 6, kind: output, shape index: {}]
  %s7 = sld [smem:[#allocation0]]
  $region68: #{cartpole_rev.1} parent=0
    _
  %s9 = ssub.s32 1, %s7
  %s10 = scalar_select 0, %s9, %s7
  %11 = sst [smem:[#allocation2]] %s5
  $region1: #{cartpole_rev.1} parent=0
    #allocation3 [shape = 'u8[65536]{0}', space=vmem, size = 0x10000, scoped, tag = 'output window, operand 0, single buffered']
    // Predicated region
    $region2: #{cartpole_rev.1} parent=1 // pred_check
      _
    $region3: #{cartpole_rev.1} parent=1 // pred_check_branch
      %13 = sbr.rel (0) target = $region5
    $region4: #{cartpole_rev.1} parent=1 // pred_region
      _
    $region5: #{cartpole_rev.1} parent=1 // pred_fallthru
      _
    // Predicated region
    $region6: #{cartpole_rev.1} parent=1 // pred_check
      _
    $region7: #{cartpole_rev.1} parent=1 // pred_check_branch
      %15 = sbr.rel (0) target = $region9
    $region8: #{cartpole_rev.1} parent=1 // pred_region
      _
    $region9: #{cartpole_rev.1} parent=1 // pred_fallthru
      _
    // Predicated region
    $region10: #{cartpole_rev.1} parent=1 // pred_check
      _
    $region11: #{cartpole_rev.1} parent=1 // pred_check_branch
      %17 = sbr.rel (0) target = $region13
    $region12: #{cartpole_rev.1} parent=1 // pred_region
      _
    $region13: #{cartpole_rev.1} parent=1 // pred_fallthru
      _
    // Predicated region
    $region14: #{cartpole_rev.1} parent=1 // pred_check
      _
    $region15: #{cartpole_rev.1} parent=1 // pred_check_branch
      %19 = sbr.rel (0) target = $region17
    $region16: #{cartpole_rev.1} parent=1 // pred_region
      _
    $region17: #{cartpole_rev.1} parent=1 // pred_fallthru
      _
    // Predicated region
    $region18: #{cartpole_rev.1} parent=1 // pred_check
      _
    $region19: #{cartpole_rev.1} parent=1 // pred_check_branch
      %21 = sbr.rel (0) target = $region21
    $region20: #{cartpole_rev.1} parent=1 // pred_region
      _
    $region21: #{cartpole_rev.1} parent=1 // pred_fallthru
      _
    // Predicated region
    $region22: #{cartpole_rev.1} parent=1 // pred_check
      _
    $region23: #{cartpole_rev.1} parent=1 // pred_check_branch
      %23 = sbr.rel (0) target = $region25
    $region24: #{cartpole_rev.1} parent=1 // pred_region
      _
    $region25: #{cartpole_rev.1} parent=1 // pred_fallthru
      _
    %v25 = vld [vmem:[%s2] sm:$0xf]
    %v26 = vld [vmem:[%s3] sm:$0x1]
    %v28 = vlaneseq
    %v29 = vshrl.u32 %v28, 7
    %v30 = vsub.s32 0, %v29
    %v31 = vrot.slane %v26, %v30
    %v33 = vld [vmem:[%s4] sm:$0x1]
    %v35 = vlaneseq
    %v36 = vshrl.u32 %v35, 7
    %v37 = vsub.s32 0, %v36
    %v38 = vrot.slane %v33, %v37
    %s40 = sld [smem:[#allocation2]]
    %v41 = vld [vmem:[%s0] sm:$0xff]
    %v42 = vld [vmem:[%s0 + $0x8] sm:$0xff]
    %v43 = vld [vmem:[%s0 + $0x10] sm:$0xff]
    %v44 = vld [vmem:[%s0 + $0x18] sm:$0xff]
    %v45 = vld [vmem:[%s0 + $0x20] sm:$0xff]
    %v46 = vld [vmem:[%s0 + $0x28] sm:$0xff]
    %v47 = vld [vmem:[%s0 + $0x30] sm:$0xff]
    %v48 = vld [vmem:[%s0 + $0x38] sm:$0xff]
    %v49 = vld [vmem:[%s0 + $0x40] sm:$0xff]
    %v50 = vld [vmem:[%s0 + $0x48] sm:$0xff]
    %v51 = vld [vmem:[%s0 + $0x50] sm:$0xff]
    %v52 = vld [vmem:[%s0 + $0x58] sm:$0xff]
    %v53 = vld [vmem:[%s0 + $0x60] sm:$0xff]
    %v54 = vld [vmem:[%s0 + $0x68] sm:$0xff]
    %v55 = vld [vmem:[%s0 + $0x70] sm:$0xff]
    %v56 = vld [vmem:[%s0 + $0x78] sm:$0xff]
    %v57 = vld [vmem:[%s1] sm:$0xff]
    %v58 = vld [vmem:[%s1 + $0x8] sm:$0xff]
    %v59 = vld [vmem:[%s1 + $0x10] sm:$0xff]
    %v60 = vld [vmem:[%s1 + $0x18] sm:$0xff]
    %v61 = vld [vmem:[%s1 + $0x20] sm:$0xff]
    %v62 = vld [vmem:[%s1 + $0x28] sm:$0xff]
    %v63 = vld [vmem:[%s1 + $0x30] sm:$0xff]
    %v64 = vld [vmem:[%s1 + $0x38] sm:$0xff]
    %v65 = vld [vmem:[%s1 + $0x40] sm:$0xff]
    %v66 = vld [vmem:[%s1 + $0x48] sm:$0xff]
    %v67 = vld [vmem:[%s1 + $0x50] sm:$0xff]
    %v68 = vld [vmem:[%s1 + $0x58] sm:$0xff]
    %v69 = vld [vmem:[%s1 + $0x60] sm:$0xff]
    %v70 = vld [vmem:[%s1 + $0x68] sm:$0xff]
    %v71 = vld [vmem:[%s1 + $0x70] sm:$0xff]
    %v72 = vld [vmem:[%s1 + $0x78] sm:$0xff]
    %89 = vrot.lane.b32.xlu0 %v57, 4
    %v90 = vpop.permute.xlu0 %89
    %91 = vrot.lane.b32.xlu0 %v58, 4
    %v92 = vpop.permute.xlu0 %91
    %93 = vrot.lane.b32.xlu0 %v59, 4
    %v94 = vpop.permute.xlu0 %93
    %95 = vrot.lane.b32.xlu0 %v60, 4
    %v96 = vpop.permute.xlu0 %95
    %97 = vrot.lane.b32.xlu0 %v61, 4
    %v98 = vpop.permute.xlu0 %97
    %99 = vrot.lane.b32.xlu0 %v62, 4
    %v100 = vpop.permute.xlu0 %99
    %101 = vrot.lane.b32.xlu0 %v63, 4
    %v102 = vpop.permute.xlu0 %101
    %103 = vrot.lane.b32.xlu0 %v64, 4
    %v104 = vpop.permute.xlu0 %103
    %105 = vrot.lane.b32.xlu0 %v65, 4
    %v106 = vpop.permute.xlu0 %105
    %107 = vrot.lane.b32.xlu0 %v66, 4
    %v108 = vpop.permute.xlu0 %107
    %109 = vrot.lane.b32.xlu0 %v67, 4
    %v110 = vpop.permute.xlu0 %109
    %111 = vrot.lane.b32.xlu0 %v68, 4
    %v112 = vpop.permute.xlu0 %111
    %113 = vrot.lane.b32.xlu0 %v69, 4
    %v114 = vpop.permute.xlu0 %113
    %115 = vrot.lane.b32.xlu0 %v70, 4
    %v116 = vpop.permute.xlu0 %115
    %117 = vrot.lane.b32.xlu0 %v71, 4
    %v118 = vpop.permute.xlu0 %117
    %119 = vrot.lane.b32.xlu0 %v72, 4
    %v120 = vpop.permute.xlu0 %119
    %vm137 = vcmask 31744
    %v138 = vsel %vm137, %v41, %v90
    %v139 = vsel %vm137, %v42, %v92
    %v140 = vsel %vm137, %v43, %v94
    %v141 = vsel %vm137, %v44, %v96
    %v142 = vsel %vm137, %v45, %v98
    %v143 = vsel %vm137, %v46, %v100
    %v144 = vsel %vm137, %v47, %v102
    %v145 = vsel %vm137, %v48, %v104
    %v146 = vsel %vm137, %v49, %v106
    %v147 = vsel %vm137, %v50, %v108
    %v148 = vsel %vm137, %v51, %v110
    %v149 = vsel %vm137, %v52, %v112
    %v150 = vsel %vm137, %v53, %v114
    %v151 = vsel %vm137, %v54, %v116
    %v152 = vsel %vm137, %v55, %v118
    %v153 = vsel %vm137, %v56, %v120
    %v154 = vpack.c.bf16 %v139, %v138
    %v155 = vpack.c.bf16 %v141, %v140
    %v156 = vpack.c.bf16 %v143, %v142
    %v157 = vpack.c.bf16 %v145, %v144
    %v158 = vpack.c.bf16 %v147, %v146
    %v159 = vpack.c.bf16 %v149, %v148
    %v160 = vpack.c.bf16 %v151, %v150
    %v161 = vpack.c.bf16 %v153, %v152
    %vm162 = vcmask 64512
    %v164 = vsel %vm162, %v154, 0
    %v167 = vsel %vm162, %v155, 0
    %v170 = vsel %vm162, %v156, 0
    %v173 = vsel %vm162, %v157, 0
    %v176 = vsel %vm162, %v158, 0
    %v179 = vsel %vm162, %v159, 0
    %v182 = vsel %vm162, %v160, 0
    %v185 = vsel %vm162, %v161, 0
    %vm187 = vcmask 1043456
    %v189 = vsel %vm187, %v25, 0
    %191 = vmatprep.subr.bf16.mxu0 0
    %192 = vmatpush1.bf16.msra.mxu0 0
    %193 = vmatprep.subr.bf16.mxu0 0
    %194 = vmatpush1.bf16.msra.mxu0 0
    %195 = vmatprep.subr.bf16.mxu0 0
    %196 = vmatpush1.bf16.msra.mxu0 0
    %197 = vmatprep.subr.bf16.mxu0 0
    %198 = vmatpush1.bf16.msra.mxu0 0
    %199 = vmatprep.subr.bf16.mxu0 0
    %200 = vmatpush1.bf16.msra.mxu0 0
    %201 = vmatprep.subr.bf16.mxu0 0
    %202 = vmatpush1.bf16.msra.mxu0 0
    %203 = vmatprep.subr.bf16.mxu0 0
    %204 = vmatpush1.bf16.msra.mxu0 0
    %205 = vmatprep.subr.bf16.mxu0 0
    %206 = vmatpush1.bf16.msra.mxu0 %v189
    %207 = vmatprep.subr.bf16.mxu0 0
    %208 = vmatpush2.bf16.msra.mxu0 0
    %209 = vmatprep.subr.bf16.mxu0 0
    %210 = vmatpush2.bf16.msra.mxu0 0
    %211 = vmatprep.subr.bf16.mxu0 0
    %212 = vmatpush2.bf16.msra.mxu0 0
    %213 = vmatprep.subr.bf16.mxu0 0
    %214 = vmatpush2.bf16.msra.mxu0 0
    %215 = vmatprep.subr.bf16.mxu0 0
    %216 = vmatpush2.bf16.msra.mxu0 0
    %217 = vmatprep.subr.bf16.mxu0 0
    %218 = vmatpush2.bf16.msra.mxu0 0
    %219 = vmatprep.subr.bf16.mxu0 0
    %220 = vmatpush2.bf16.msra.mxu0 0
    %221 = vmatprep.subr.bf16.mxu0 0
    %222 = vmatpush2.bf16.msra.mxu0 0
    %223 = vmatprep.mubr.bf16.mxu0 0
    %224 = vmatmul.mubr.bf16.gmra.mxu0 %v164
    %v225 = vpop.f32.mrf.mxu0
    %v226 = vadd.f32 %v31, %v225
    %v227 = vpop.f32.mrf.mxu0
    %v228 = vpop.f32.mrf.mxu0
    %v229 = vadd.f32 %v31, %v228
    %v230 = vpop.f32.mrf.mxu0
    %231 = vmatprep.mubr.bf16.mxu0 0
    %232 = vmatmul.mubr.bf16.gmra.mxu0 %v167
    %v233 = vpop.f32.mrf.mxu0
    %v234 = vadd.f32 %v31, %v233
    %v235 = vpop.f32.mrf.mxu0
    %v236 = vpop.f32.mrf.mxu0
    %v237 = vadd.f32 %v31, %v236
    %v238 = vpop.f32.mrf.mxu0
    %239 = vmatprep.mubr.bf16.mxu0 0
    %240 = vmatmul.mubr.bf16.gmra.mxu0 %v170
    %v241 = vpop.f32.mrf.mxu0
    %v242 = vadd.f32 %v31, %v241
    %v243 = vpop.f32.mrf.mxu0
    %v244 = vpop.f32.mrf.mxu0
    %v245 = vadd.f32 %v31, %v244
    %v246 = vpop.f32.mrf.mxu0
    %247 = vmatprep.mubr.bf16.mxu0 0
    %248 = vmatmul.mubr.bf16.gmra.mxu0 %v173
    %v249 = vpop.f32.mrf.mxu0
    %v250 = vadd.f32 %v31, %v249
    %v251 = vpop.f32.mrf.mxu0
    %v252 = vpop.f32.mrf.mxu0
    %v253 = vadd.f32 %v31, %v252
    %v254 = vpop.f32.mrf.mxu0
    %255 = vmatprep.mubr.bf16.mxu0 0
    %256 = vmatmul.mubr.bf16.gmra.mxu0 %v176
    %v257 = vpop.f32.mrf.mxu0
    %v258 = vadd.f32 %v31, %v257
    %v259 = vpop.f32.mrf.mxu0
    %v260 = vpop.f32.mrf.mxu0
    %v261 = vadd.f32 %v31, %v260
    %v262 = vpop.f32.mrf.mxu0
    %263 = vmatprep.mubr.bf16.mxu0 0
    %264 = vmatmul.mubr.bf16.gmra.mxu0 %v179
    %v265 = vpop.f32.mrf.mxu0
    %v266 = vadd.f32 %v31, %v265
    %v267 = vpop.f32.mrf.mxu0
    %v268 = vpop.f32.mrf.mxu0
    %v269 = vadd.f32 %v31, %v268
    %v270 = vpop.f32.mrf.mxu0
    %271 = vmatprep.mubr.bf16.mxu0 0
    %272 = vmatmul.mubr.bf16.gmra.mxu0 %v182
    %v273 = vpop.f32.mrf.mxu0
    %v274 = vadd.f32 %v31, %v273
    %v275 = vpop.f32.mrf.mxu0
    %v276 = vpop.f32.mrf.mxu0
    %v277 = vadd.f32 %v31, %v276
    %v278 = vpop.f32.mrf.mxu0
    %279 = vmatprep.mubr.bf16.mxu0 0
    %280 = vmatmul.mubr.bf16.gmra.mxu0 %v185
    %v281 = vpop.f32.mrf.mxu0
    %v282 = vadd.f32 %v31, %v281
    %v283 = vpop.f32.mrf.mxu0
    %v284 = vpop.f32.mrf.mxu0
    %v285 = vadd.f32 %v31, %v284
    %v286 = vpop.f32.mrf.mxu0
    %287 = vdwg.mxu0
    %v288 = vmax.f32 %v226, 0.0
    %v289 = vmax.f32 %v229, 0.0
    %v290 = vmax.f32 %v234, 0.0
    %v291 = vmax.f32 %v237, 0.0
    %v292 = vmax.f32 %v242, 0.0
    %v293 = vmax.f32 %v245, 0.0
    %v294 = vmax.f32 %v250, 0.0
    %v295 = vmax.f32 %v253, 0.0
    %v296 = vmax.f32 %v258, 0.0
    %v297 = vmax.f32 %v261, 0.0
    %v298 = vmax.f32 %v266, 0.0
    %v299 = vmax.f32 %v269, 0.0
    %v300 = vmax.f32 %v274, 0.0
    %v301 = vmax.f32 %v277, 0.0
    %v302 = vmax.f32 %v282, 0.0
    %v303 = vmax.f32 %v285, 0.0
    %v304 = vmul.f32 %v288, %v38
    %v305 = vmul.f32 %v289, %v38
    %v306 = vmul.f32 %v290, %v38
    %v307 = vmul.f32 %v291, %v38
    %v308 = vmul.f32 %v292, %v38
    %v309 = vmul.f32 %v293, %v38
    %v310 = vmul.f32 %v294, %v38
    %v311 = vmul.f32 %v295, %v38
    %v312 = vmul.f32 %v296, %v38
    %v313 = vmul.f32 %v297, %v38
    %v314 = vmul.f32 %v298, %v38
    %v315 = vmul.f32 %v299, %v38
    %v316 = vmul.f32 %v300, %v38
    %v317 = vmul.f32 %v301, %v38
    %v318 = vmul.f32 %v302, %v38
    %v319 = vmul.f32 %v303, %v38
    %320 = vadd.xlane.f32.xlu0 %v304
    %v321 = vpop.xlane.xlu0 %320
    %322 = vadd.xlane.f32.xlu0 %v305
    %v323 = vpop.xlane.xlu0 %322
    %324 = vadd.xlane.f32.xlu0 %v306
    %v325 = vpop.xlane.xlu0 %324
    %326 = vadd.xlane.f32.xlu0 %v307
    %v327 = vpop.xlane.xlu0 %326
    %328 = vadd.xlane.f32.xlu0 %v308
    %v329 = vpop.xlane.xlu0 %328
    %330 = vadd.xlane.f32.xlu0 %v309
    %v331 = vpop.xlane.xlu0 %330
    %332 = vadd.xlane.f32.xlu0 %v310
    %v333 = vpop.xlane.xlu0 %332
    %334 = vadd.xlane.f32.xlu0 %v311
    %v335 = vpop.xlane.xlu0 %334
    %336 = vadd.xlane.f32.xlu0 %v312
    %v337 = vpop.xlane.xlu0 %336
    %338 = vadd.xlane.f32.xlu0 %v313
    %v339 = vpop.xlane.xlu0 %338
    %340 = vadd.xlane.f32.xlu0 %v314
    %v341 = vpop.xlane.xlu0 %340
    %342 = vadd.xlane.f32.xlu0 %v315
    %v343 = vpop.xlane.xlu0 %342
    %344 = vadd.xlane.f32.xlu0 %v316
    %v345 = vpop.xlane.xlu0 %344
    %346 = vadd.xlane.f32.xlu0 %v317
    %v347 = vpop.xlane.xlu0 %346
    %348 = vadd.xlane.f32.xlu0 %v318
    %v349 = vpop.xlane.xlu0 %348
    %350 = vadd.xlane.f32.xlu0 %v319
    %v351 = vpop.xlane.xlu0 %350
    %v352 = vstv %s40
    %v353 = vadd.f32 %v321, %v352
    %v354 = vadd.f32 %v323, %v352
    %v355 = vadd.f32 %v325, %v352
    %v356 = vadd.f32 %v327, %v352
    %v357 = vadd.f32 %v329, %v352
    %v358 = vadd.f32 %v331, %v352
    %v359 = vadd.f32 %v333, %v352
    %v360 = vadd.f32 %v335, %v352
    %v361 = vadd.f32 %v337, %v352
    %v362 = vadd.f32 %v339, %v352
    %v363 = vadd.f32 %v341, %v352
    %v364 = vadd.f32 %v343, %v352
    %v365 = vadd.f32 %v345, %v352
    %v366 = vadd.f32 %v347, %v352
    %v367 = vadd.f32 %v349, %v352
    %v368 = vadd.f32 %v351, %v352
    %vm369 = vcmask 7168
    %370 = vst.msk [vmem:[#allocation3] sm:$0xff] %vm369, %v353
    %371 = vst.msk [vmem:[#allocation3 + $0x8] sm:$0xff] %vm369, %v354
    %372 = vst.msk [vmem:[#allocation3 + $0x10] sm:$0xff] %vm369, %v355
    %373 = vst.msk [vmem:[#allocation3 + $0x18] sm:$0xff] %vm369, %v356
    %374 = vst.msk [vmem:[#allocation3 + $0x20] sm:$0xff] %vm369, %v357
    %375 = vst.msk [vmem:[#allocation3 + $0x28] sm:$0xff] %vm369, %v358
    %376 = vst.msk [vmem:[#allocation3 + $0x30] sm:$0xff] %vm369, %v359
    %377 = vst.msk [vmem:[#allocation3 + $0x38] sm:$0xff] %vm369, %v360
    %378 = vst.msk [vmem:[#allocation3 + $0x40] sm:$0xff] %vm369, %v361
    %379 = vst.msk [vmem:[#allocation3 + $0x48] sm:$0xff] %vm369, %v362
    %380 = vst.msk [vmem:[#allocation3 + $0x50] sm:$0xff] %vm369, %v363
    %381 = vst.msk [vmem:[#allocation3 + $0x58] sm:$0xff] %vm369, %v364
    %382 = vst.msk [vmem:[#allocation3 + $0x60] sm:$0xff] %vm369, %v365
    %383 = vst.msk [vmem:[#allocation3 + $0x68] sm:$0xff] %vm369, %v366
    %384 = vst.msk [vmem:[#allocation3 + $0x70] sm:$0xff] %vm369, %v367
    %385 = vst.msk [vmem:[#allocation3 + $0x78] sm:$0xff] %vm369, %v368
    // Predicated region
    $region26: #{cartpole_rev.1} parent=1 // pred_check
      _
    $region27: #{cartpole_rev.1} parent=1 // pred_check_branch
      %387 = sbr.rel (0) target = $region29
    $region28: #{cartpole_rev.1} parent=1 // pred_region
      // Predicated region
      $region30: #{cartpole_rev.1} parent=28 // pred_check
        _
      $region31: #{cartpole_rev.1} parent=28 // pred_check_branch
        %389 = sbr.rel (0) target = $region33
      $region32: #{cartpole_rev.1} parent=28 // pred_region
        // Predicated region
        $region34: #{cartpole_rev.1} parent=32 // pred_check
          _
        $region35: #{cartpole_rev.1} parent=32 // pred_check_branch
          %391 = sbr.rel (0) target = $region37
        $region36: #{cartpole_rev.1} parent=32 // pred_region
          // Predicated region
          $region49: #{cartpole_rev.1} parent=36 // pred_check
            _
          $region50: #{cartpole_rev.1} parent=36 // pred_check_branch
            %407 = sbr.rel (0) target = $region52
          $region51: #{cartpole_rev.1} parent=36 // pred_region
            loop: start=0, step=1, limit=1
            $region53: #{cartpole_rev.1} parent=51 // loop_pre_header
              _
            $region54: #{cartpole_rev.1} parent=51 // loop_header
              %s409 = sphi 0, %s413
              %p410 = scmp.ge.s32.totalorder %s409, 1
              %s414 = sphi [#allocation3], [#allocation3]
              %s415 = sphi %s6, %s6
            $region55: #{cartpole_rev.1} parent=51 // loop_header_branch
              %412 = sbr.rel (%p410) target = $region59
            $region56: #{cartpole_rev.1} parent=51 // loop_body
              %v416 = vld [vmem:[%s414] sm:$0xff]
              %417 = vst [vmem:[%s415] sm:$0xff] %v416
            $region57: #{cartpole_rev.1} parent=51 // loop_footer
              %s413 = sadd.s32 1, %s409
            $region58: #{cartpole_rev.1} parent=51 // loop_footer_branch
              %408 = sbr.rel target = $region54
            $region59: #{cartpole_rev.1} parent=51 // loop_exit
              _
          $region52: #{cartpole_rev.1} parent=36 // pred_fallthru
            _
          // Predicated region
          $region60: #{cartpole_rev.1} parent=36 // pred_check
            _
          $region61: #{cartpole_rev.1} parent=36 // pred_check_branch
            %419 = sbr.rel target = $region63
          $region62: #{cartpole_rev.1} parent=36 // pred_region
            _
          $region63: #{cartpole_rev.1} parent=36 // pred_fallthru
            _
        $region37: #{cartpole_rev.1} parent=32 // pred_fallthru
          _
        // Predicated region
        $region38: #{cartpole_rev.1} parent=32 // pred_check
          _
        $region39: #{cartpole_rev.1} parent=32 // pred_check_branch
          %393 = sbr.rel target = $region41
        $region40: #{cartpole_rev.1} parent=32 // pred_region
          %s395 = ssub.s32 256, 1
          loop: start=0, step=1, limit=1
          $region42: #{cartpole_rev.1} parent=40 // loop_pre_header
            _
          $region43: #{cartpole_rev.1} parent=40 // loop_header
            %s397 = sphi 0, %s401
            %p398 = scmp.ge.s32.totalorder %s397, 1
            %s402 = sphi [#allocation3], [#allocation3]
            %s403 = sphi %s6, %s6
          $region44: #{cartpole_rev.1} parent=40 // loop_header_branch
            %400 = sbr.rel (%p398) target = $region48
          $region45: #{cartpole_rev.1} parent=40 // loop_body
            %v404 = vld [vmem:[%s402] sm:%s395]
            %405 = vst [vmem:[%s403] sm:%s395] %v404
          $region46: #{cartpole_rev.1} parent=40 // loop_footer
            %s401 = sadd.s32 1, %s397
          $region47: #{cartpole_rev.1} parent=40 // loop_footer_branch
            %396 = sbr.rel target = $region43
          $region48: #{cartpole_rev.1} parent=40 // loop_exit
            _
        $region41: #{cartpole_rev.1} parent=32 // pred_fallthru
          _
      $region33: #{cartpole_rev.1} parent=28 // pred_fallthru
        _
      %420 = vnop
    $region29: #{cartpole_rev.1} parent=1 // pred_fallthru
      _
    // Predicated region
    $region64: #{cartpole_rev.1} parent=1 // pred_check
      _
    $region65: #{cartpole_rev.1} parent=1 // pred_check_branch
      %422 = sbr.rel (0) target = $region67
    $region66: #{cartpole_rev.1} parent=1 // pred_region
      _
    $region67: #{cartpole_rev.1} parent=1 // pred_fallthru
      _

</llo_original>
